<compile_context>
chip_gen: v6e
topology: v6e:2x2x1
jax: 0.10.0
libtpu: 0.0.40
codegen_flags: <defaults>
</compile_context>

<pallas_src>
import jax
import jax.numpy as jnp
from jax import lax
from jax.experimental import pallas as pl
from jax.experimental.pallas import tpu as pltpu

B, C_IN, H, W = 2, 4, 16, 16
Z_C = 4                    # z_shape = (Z_C, H, W)
C_OUT = 4                  # decoder output channels
HW = H * W                 # 256 -> lane axis (2 x 128, unmasked stores)
LN_EPS = 1e-5              # torch.nn.LayerNorm default eps

# fused-layout sizes (kernel is specialized to B == 2 via the "rest is sample 1"
# reduction trick below)
BK = B * C_IN              # encoder contraction dim          = 8
BZ = B * Z_C               # latent rows (B, Z_C) flattened   = 8
BO = B * C_OUT             # output rows (B, C_OUT) flattened = 8
ENC_ROWS = 2 * BZ          # mean rows + logvar rows          = 16
DEC_W0 = 16                # column offset of decoder weight in the param slab
N_PER = Z_C * HW           # per-sample LayerNorm element count
N_Z = B * Z_C * HW         # total latent element count


def ldm_forward_kernel(x_ref, eps_ref, p_ref, zdec_ref, stats_ref):
    # x_ref:    (B*C_IN, HW)  = (8, 256)   channels-on-sublane, pixels-on-lane
    # eps_ref:  (B*Z_C,  HW)  = (8, 256)
    # p_ref:    (16, 128) parameter slab:
    #             [:, 0:BK]              block-diag encoder lhs (mean rows 0:BZ,
    #                                    logvar rows BZ:2*BZ)
    #             [:, BK:BK+1]           encoder bias column
    #             [0:BO, DEC_W0:+BZ]     block-diag decoder lhs
    #             [0:BO, DEC_W0+BZ:+1]   decoder bias column
    # zdec_ref: (B*C_OUT, HW) = (8, 256)
    # stats_ref:(1, 128)  lanes [kl_loss, z_gau_mean_abs, z_gau_std, 0...]
    x = x_ref[...]                                        # (8, 256)
    eps = eps_ref[...]                                    # (8, 256)

    w_enc = p_ref[:, 0:BK]                                # (16, 8)
    b_enc = p_ref[:, BK:BK + 1]                           # (16, 1)
    w_dec = p_ref[0:BO, DEC_W0:DEC_W0 + BZ]               # (8, 8)
    b_dec = p_ref[0:BO, DEC_W0 + BZ:DEC_W0 + BZ + 1]      # (8, 1)

    # --- encoder: ONE fused matmul (both heads x both samples, block-diag lhs) ---
    enc = jnp.dot(w_enc, x, preferred_element_type=jnp.float32) + b_enc   # (16, 256)

    mean = enc[0:BZ]                                      # (8, 256), 8-aligned slice
    logvar = jnp.clip(enc[BZ:2 * BZ], -30.0, 20.0)        # (8, 256)

    # --- DiagonalGaussianDistribution ---
    std = jnp.exp(0.5 * logvar)
    var = std * std                                       # avoids a second exp
    z = mean + std * eps                                  # sample(): (8, 256)

    # batch-summed statistics (only the batch-mean is needed downstream)
    kl_sum = jnp.sum(mean * mean + var - 1.0 - logvar, keepdims=True)     # (1, 1)
    mean_abs_sum = jnp.sum(jnp.abs(mean), keepdims=True)                  # (1, 1)
    std_sum = jnp.sum(std, keepdims=True)                                 # (1, 1)

    # --- z_layernorm: per-sample LayerNorm over (Z_C, H, W), no affine ---
    # sample 0 lives on sublane rows [0, Z_C), sample 1 on [Z_C, 2*Z_C)  (B == 2)
    inv_n = 1.0 / float(N_PER)
    row_s0 = lax.broadcasted_iota(jnp.int32, (BZ, 1), 0) < Z_C            # (8, 1)
    s_all = jnp.sum(z, keepdims=True)
    s0 = jnp.sum(jnp.where(row_s0, z, 0.0), keepdims=True)
    mu0 = s0 * inv_n
    mu1 = (s_all - s0) * inv_n
    mu_col = jnp.where(row_s0, mu0, mu1)                                  # (8, 1)
    zc = z - mu_col
    zc2 = zc * zc
    q_all = jnp.sum(zc2, keepdims=True)
    q0 = jnp.sum(jnp.where(row_s0, zc2, 0.0), keepdims=True)
    r0 = lax.rsqrt(q0 * inv_n + LN_EPS)
    r1 = lax.rsqrt((q_all - q0) * inv_n + LN_EPS)
    rsig_col = jnp.where(row_s0, r0, r1)                                  # (8, 1)
    zn = zc * rsig_col                                                    # (8, 256)

    # --- decoder: ONE fused matmul + single bias add, unmasked (8,256) store ---
    zdec_ref[...] = jnp.dot(w_dec, zn, preferred_element_type=jnp.float32) + b_dec

    # --- pack kl_loss / z_gau_mean_abs / z_gau_std into one (1,128) slab ---
    kl_mean = 0.5 * kl_sum / float(B)          # posterior.kl().mean()
    mean_abs = mean_abs_sum / float(N_Z)       # posterior.mean.abs().mean()
    std_mean = std_sum / float(N_Z)            # posterior.std.mean()

    lane = lax.broadcasted_iota(jnp.int32, (1, 128), 1)
    stats = jnp.where(lane == 0, kl_mean, 0.0)
    stats = jnp.where(lane == 1, mean_abs, stats)
    stats = jnp.where(lane == 2, std_mean, stats)
    stats_ref[...] = stats


def ldm_forward(x_nchw, eps_nchw, w_enc, b_enc, w_dec, b_dec):
    """Wrapper: free-reshape glue + tiny parameter packing. Returns (z_dec, ret)."""
    # (B, C, H, W) -> (B*C, HW) is a FREE reshape (no transpose): channels stay
    # on the sublane axis, H*W = 256 pixels land on the 128-lane axis.
    x = x_nchw.reshape(B * C_IN, HW)
    eps = eps_nchw.reshape(B * Z_C, HW)

    # --- pack ALL parameters into one (16, 128) slab (a few hundred floats) ---
    # Block-diagonal lhs so one matmul handles both batch samples.
    eye_b = jnp.eye(B, dtype=jnp.float32)
    w_mean_t = w_enc[:, :Z_C].T                           # (Z_C, C_IN)
    w_lv_t = w_enc[:, Z_C:].T                             # (Z_C, C_IN)
    w_enc_bd = jnp.concatenate(
        [jnp.kron(eye_b, w_mean_t), jnp.kron(eye_b, w_lv_t)], axis=0)   # (16, 8)
    b_enc_col = jnp.concatenate(
        [jnp.tile(b_enc[:Z_C], B), jnp.tile(b_enc[Z_C:], B)])[:, None]  # (16, 1)
    w_dec_bd = jnp.kron(eye_b, w_dec.T)                   # (8, 8)
    b_dec_col = jnp.tile(b_dec, B)[:, None]               # (8, 1)

    slab = jnp.zeros((ENC_ROWS, 128), jnp.float32)
    slab = slab.at[:, 0:BK].set(w_enc_bd)
    slab = slab.at[:, BK:BK + 1].set(b_enc_col)
    slab = slab.at[0:BO, DEC_W0:DEC_W0 + BZ].set(w_dec_bd)
    slab = slab.at[0:BO, DEC_W0 + BZ:DEC_W0 + BZ + 1].set(b_dec_col)

    vmem = pl.BlockSpec(memory_space=pltpu.MemorySpace.VMEM)
    zdec_flat, stats = pl.pallas_call(
        ldm_forward_kernel,
        out_shape=(
            jax.ShapeDtypeStruct((B * C_OUT, HW), jnp.float32),  # lane-dense output
            jax.ShapeDtypeStruct((1, 128), jnp.float32),         # packed scalars
        ),
        in_specs=[vmem, vmem, vmem],
        out_specs=(vmem, vmem),
    )(x, eps, slab)

    z_dec = zdec_flat.reshape(B, C_OUT, H, W)   # free reshape back to NCHW
    ret = {
        'loss': jnp.float32(0.0),               # no zdm / decoding losses configured
        'kl_loss': stats[0, 0],                 # printed (not added to loss) in forward
        'z_gau_mean_abs': stats[0, 1],
        'z_gau_std': stats[0, 2],
    }
    # TODO(synk): renderer / zdm diffusion sampler / VectorQuantizer / EMA swaps /
    # training-time zaug & drop_z branches come from external `models.make`
    # configs, have no concrete definition here, and are not exercised on the
    # eval z_dec path.
    return z_dec, ret


def ldm_forward_ref(x_nchw, eps_nchw, w_enc, b_enc, w_dec, b_dec):
    """Pure-JAX reference mirroring the PyTorch NCHW semantics."""
    params = jnp.einsum('bchw,cd->bdhw', x_nchw, w_enc) + b_enc[None, :, None, None]
    mean = params[:, :Z_C]
    logvar = jnp.clip(params[:, Z_C:], -30.0, 20.0)
    std = jnp.exp(0.5 * logvar)
    var = jnp.exp(logvar)
    z = mean + std * eps_nchw
    kl = 0.5 * jnp.sum(mean ** 2 + var - 1.0 - logvar, axis=(1, 2, 3))
    mu = jnp.mean(z, axis=(1, 2, 3), keepdims=True)
    v = jnp.mean((z - mu) ** 2, axis=(1, 2, 3), keepdims=True)
    zn = (z - mu) / jnp.sqrt(v + LN_EPS)
    z_dec = jnp.einsum('bzhw,zc->bchw', zn, w_dec) + b_dec[None, :, None, None]
    return z_dec, kl, jnp.mean(jnp.abs(mean)), jnp.mean(std)


if __name__ == "__main__":
    key = jax.random.PRNGKey(0)
    k_x, k_eps, k_we, k_be, k_wd, k_bd = jax.random.split(key, 6)

    # deterministic synthetic inputs & parameters
    x = jax.random.normal(k_x, (B, C_IN, H, W), dtype=jnp.float32)
    eps = jax.random.normal(k_eps, (B, Z_C, H, W), dtype=jnp.float32)  # gaussian noise
    w_enc = 0.1 * jax.random.normal(k_we, (C_IN, 2 * Z_C), dtype=jnp.float32)
    b_enc = 0.05 * jax.random.normal(k_be, (2 * Z_C,), dtype=jnp.float32)
    w_dec = 0.1 * jax.random.normal(k_wd, (Z_C, C_OUT), dtype=jnp.float32)
    b_dec = 0.05 * jax.random.normal(k_bd, (C_OUT,), dtype=jnp.float32)

    z_dec, ret = ldm_forward(x, eps, w_enc, b_enc, w_dec, b_dec)
    jax.block_until_ready((z_dec, ret))

    # sanity-check against the pure-JAX reference
    z_dec_ref, kl_ref, mean_abs_ref, std_mean_ref = ldm_forward_ref(
        x, eps, w_enc, b_enc, w_dec, b_dec)
    assert z_dec.shape == (B, C_OUT, H, W)
    assert jnp.allclose(z_dec, z_dec_ref, rtol=2e-3, atol=2e-3)
    assert jnp.allclose(ret['kl_loss'], jnp.mean(kl_ref), rtol=2e-3, atol=2e-3)
    assert jnp.allclose(ret['z_gau_mean_abs'], mean_abs_ref, rtol=2e-3, atol=2e-3)
    assert jnp.allclose(ret['z_gau_std'], std_mean_ref, rtol=2e-3, atol=2e-3)

    print("KERNEL_OK")
</pallas_src>

<mosaic_0001>
module attributes {stable_mosaic.version = 11 : i64} {
  func.func @ldm_forward_kernel(%arg0: memref<8x256xf32, #tpu.memory_space<vmem>>, %arg1: memref<8x256xf32, #tpu.memory_space<vmem>>, %arg2: memref<16x128xf32, #tpu.memory_space<vmem>>, %arg3: memref<8x256xf32, #tpu.memory_space<vmem>>, %arg4: memref<1x128xf32, #tpu.memory_space<vmem>>) attributes {dimension_semantics = [], scalar_prefetch = 0 : i64, scratch_operands = 0 : i64, tpu.core_type = #tpu.core_type<tc>} {
    %c0 = arith.constant 0 : index
    %c0_0 = arith.constant 0 : index
    %0 = vector.load %arg0[%c0, %c0_0] : memref<8x256xf32, #tpu.memory_space<vmem>>, vector<8x256xf32>
    %c0_1 = arith.constant 0 : index
    %c0_2 = arith.constant 0 : index
    %1 = vector.load %arg1[%c0_1, %c0_2] : memref<8x256xf32, #tpu.memory_space<vmem>>, vector<8x256xf32>
    %c0_3 = arith.constant 0 : index
    %c0_4 = arith.constant 0 : index
    %2 = vector.load %arg2[%c0_3, %c0_4] : memref<16x128xf32, #tpu.memory_space<vmem>>, vector<16x8xf32>
    %c0_5 = arith.constant 0 : index
    %c8 = arith.constant 8 : index
    %3 = vector.load %arg2[%c0_5, %c8] : memref<16x128xf32, #tpu.memory_space<vmem>>, vector<16x1xf32>
    %c0_6 = arith.constant 0 : index
    %c16 = arith.constant 16 : index
    %4 = vector.load %arg2[%c0_6, %c16] : memref<16x128xf32, #tpu.memory_space<vmem>>, vector<8x8xf32>
    %c0_7 = arith.constant 0 : index
    %c24 = arith.constant 24 : index
    %5 = vector.load %arg2[%c0_7, %c24] : memref<16x128xf32, #tpu.memory_space<vmem>>, vector<8x1xf32>
    %cst = arith.constant dense<0.000000e+00> : vector<16x256xf32>
    %6 = tpu.matmul %2, %0, %cst {dimension_numbers = #tpu.dot_dimension_numbers<[1], [0], [0], [1], [0, 0, 1, 1], [], []>} : vector<16x8xf32>, vector<8x256xf32>, vector<16x256xf32> -> vector<16x256xf32>
    %7 = vector.broadcast %3 : vector<16x1xf32> to vector<16x256xf32>
    %8 = arith.addf %6, %7 : vector<16x256xf32>
    %9 = vector.extract_strided_slice %8 {offsets = [0, 0], sizes = [8, 256], strides = [1, 1]} : vector<16x256xf32> to vector<8x256xf32>
    %10 = vector.extract_strided_slice %8 {offsets = [8, 0], sizes = [8, 256], strides = [1, 1]} : vector<16x256xf32> to vector<8x256xf32>
    %cst_8 = arith.constant -3.000000e+01 : f32
    %cst_9 = arith.constant 2.000000e+01 : f32
    %11 = vector.broadcast %cst_8 : f32 to vector<8x256xf32>
    %12 = arith.maximumf %11, %10 : vector<8x256xf32>
    %13 = vector.broadcast %cst_9 : f32 to vector<8x256xf32>
    %14 = arith.minimumf %13, %12 : vector<8x256xf32>
    %cst_10 = arith.constant 5.000000e-01 : f32
    %15 = vector.broadcast %cst_10 : f32 to vector<8x256xf32>
    %16 = arith.mulf %15, %14 : vector<8x256xf32>
    %17 = math.exp %16 : vector<8x256xf32>
    %18 = arith.mulf %17, %17 : vector<8x256xf32>
    %19 = arith.mulf %17, %1 : vector<8x256xf32>
    %20 = arith.addf %9, %19 : vector<8x256xf32>
    %21 = arith.mulf %9, %9 : vector<8x256xf32>
    %22 = arith.addf %21, %18 : vector<8x256xf32>
    %cst_11 = arith.constant 1.000000e+00 : f32
    %23 = vector.broadcast %cst_11 : f32 to vector<8x256xf32>
    %24 = arith.subf %22, %23 : vector<8x256xf32>
    %25 = arith.subf %24, %14 : vector<8x256xf32>
    %26 = vector.shape_cast %25 : vector<8x256xf32> to vector<1x8x256xf32>
    %cst_12 = arith.constant dense<0.000000e+00> : vector<1xf32>
    %27 = vector.multi_reduction <add>, %26, %cst_12 [1, 2] : vector<1x8x256xf32> to vector<1xf32>
    %28 = vector.shape_cast %27 : vector<1xf32> to vector<1x1x1xf32>
    %29 = vector.extract %28[0, 0, 0] : f32 from vector<1x1x1xf32>
    %30 = vector.broadcast %29 : f32 to vector<1x1xf32>
    %31 = math.absf %9 : vector<8x256xf32>
    %32 = vector.shape_cast %31 : vector<8x256xf32> to vector<1x8x256xf32>
    %cst_13 = arith.constant dense<0.000000e+00> : vector<1xf32>
    %33 = vector.multi_reduction <add>, %32, %cst_13 [1, 2] : vector<1x8x256xf32> to vector<1xf32>
    %34 = vector.shape_cast %33 : vector<1xf32> to vector<1x1x1xf32>
    %35 = vector.extract %34[0, 0, 0] : f32 from vector<1x1x1xf32>
    %36 = vector.broadcast %35 : f32 to vector<1x1xf32>
    %37 = vector.shape_cast %17 : vector<8x256xf32> to vector<1x8x256xf32>
    %cst_14 = arith.constant dense<0.000000e+00> : vector<1xf32>
    %38 = vector.multi_reduction <add>, %37, %cst_14 [1, 2] : vector<1x8x256xf32> to vector<1xf32>
    %39 = vector.shape_cast %38 : vector<1xf32> to vector<1x1x1xf32>
    %40 = vector.extract %39[0, 0, 0] : f32 from vector<1x1x1xf32>
    %41 = vector.broadcast %40 : f32 to vector<1x1xf32>
    %42 = tpu.iota {dimensions = array<i32: 0>} : vector<8x1xi32>
    %c4_i32 = arith.constant 4 : i32
    %43 = vector.broadcast %c4_i32 : i32 to vector<8x1xi32>
    %44 = arith.cmpi slt, %42, %43 : vector<8x1xi32>
    %45 = vector.shape_cast %20 : vector<8x256xf32> to vector<1x8x256xf32>
    %cst_15 = arith.constant dense<0.000000e+00> : vector<1xf32>
    %46 = vector.multi_reduction <add>, %45, %cst_15 [1, 2] : vector<1x8x256xf32> to vector<1xf32>
    %47 = vector.shape_cast %46 : vector<1xf32> to vector<1x1x1xf32>
    %48 = vector.extract %47[0, 0, 0] : f32 from vector<1x1x1xf32>
    %49 = vector.broadcast %48 : f32 to vector<1x1xf32>
    %cst_16 = arith.constant 0.000000e+00 : f32
    %50 = vector.shape_cast %44 : vector<8x1xi1> to vector<8x1xi1>
    %51 = vector.broadcast %50 : vector<8x1xi1> to vector<8x256xi1>
    %52 = vector.broadcast %cst_16 : f32 to vector<8x256xf32>
    %53 = arith.select %51, %20, %52 : vector<8x256xi1>, vector<8x256xf32>
    %54 = vector.shape_cast %53 : vector<8x256xf32> to vector<1x8x256xf32>
    %cst_17 = arith.constant dense<0.000000e+00> : vector<1xf32>
    %55 = vector.multi_reduction <add>, %54, %cst_17 [1, 2] : vector<1x8x256xf32> to vector<1xf32>
    %56 = vector.shape_cast %55 : vector<1xf32> to vector<1x1x1xf32>
    %57 = vector.extract %56[0, 0, 0] : f32 from vector<1x1x1xf32>
    %58 = vector.broadcast %57 : f32 to vector<1x1xf32>
    %cst_18 = arith.constant 9.765625E-4 : f32
    %59 = vector.broadcast %cst_18 : f32 to vector<1x1xf32>
    %60 = arith.mulf %58, %59 : vector<1x1xf32>
    %61 = arith.subf %49, %58 : vector<1x1xf32>
    %cst_19 = arith.constant 9.765625E-4 : f32
    %62 = vector.broadcast %cst_19 : f32 to vector<1x1xf32>
    %63 = arith.mulf %61, %62 : vector<1x1xf32>
    %64 = vector.shape_cast %60 : vector<1x1xf32> to vector<1x1xf32>
    %65 = vector.broadcast %64 : vector<1x1xf32> to vector<8x1xf32>
    %66 = vector.shape_cast %63 : vector<1x1xf32> to vector<1x1xf32>
    %67 = vector.broadcast %66 : vector<1x1xf32> to vector<8x1xf32>
    %68 = arith.select %44, %65, %67 : vector<8x1xi1>, vector<8x1xf32>
    %69 = vector.broadcast %68 : vector<8x1xf32> to vector<8x256xf32>
    %70 = arith.subf %20, %69 : vector<8x256xf32>
    %71 = arith.mulf %70, %70 : vector<8x256xf32>
    %72 = vector.shape_cast %71 : vector<8x256xf32> to vector<1x8x256xf32>
    %cst_20 = arith.constant dense<0.000000e+00> : vector<1xf32>
    %73 = vector.multi_reduction <add>, %72, %cst_20 [1, 2] : vector<1x8x256xf32> to vector<1xf32>
    %74 = vector.shape_cast %73 : vector<1xf32> to vector<1x1x1xf32>
    %75 = vector.extract %74[0, 0, 0] : f32 from vector<1x1x1xf32>
    %76 = vector.broadcast %75 : f32 to vector<1x1xf32>
    %cst_21 = arith.constant 0.000000e+00 : f32
    %77 = vector.shape_cast %44 : vector<8x1xi1> to vector<8x1xi1>
    %78 = vector.broadcast %77 : vector<8x1xi1> to vector<8x256xi1>
    %79 = vector.broadcast %cst_21 : f32 to vector<8x256xf32>
    %80 = arith.select %78, %71, %79 : vector<8x256xi1>, vector<8x256xf32>
    %81 = vector.shape_cast %80 : vector<8x256xf32> to vector<1x8x256xf32>
    %cst_22 = arith.constant dense<0.000000e+00> : vector<1xf32>
    %82 = vector.multi_reduction <add>, %81, %cst_22 [1, 2] : vector<1x8x256xf32> to vector<1xf32>
    %83 = vector.shape_cast %82 : vector<1xf32> to vector<1x1x1xf32>
    %84 = vector.extract %83[0, 0, 0] : f32 from vector<1x1x1xf32>
    %85 = vector.broadcast %84 : f32 to vector<1x1xf32>
    %cst_23 = arith.constant 9.765625E-4 : f32
    %86 = vector.broadcast %cst_23 : f32 to vector<1x1xf32>
    %87 = arith.mulf %85, %86 : vector<1x1xf32>
    %cst_24 = arith.constant 9.99999974E-6 : f32
    %88 = vector.broadcast %cst_24 : f32 to vector<1x1xf32>
    %89 = arith.addf %87, %88 : vector<1x1xf32>
    %90 = math.rsqrt %89 : vector<1x1xf32>
    %91 = arith.subf %76, %85 : vector<1x1xf32>
    %cst_25 = arith.constant 9.765625E-4 : f32
    %92 = vector.broadcast %cst_25 : f32 to vector<1x1xf32>
    %93 = arith.mulf %91, %92 : vector<1x1xf32>
    %cst_26 = arith.constant 9.99999974E-6 : f32
    %94 = vector.broadcast %cst_26 : f32 to vector<1x1xf32>
    %95 = arith.addf %93, %94 : vector<1x1xf32>
    %96 = math.rsqrt %95 : vector<1x1xf32>
    %97 = vector.shape_cast %90 : vector<1x1xf32> to vector<1x1xf32>
    %98 = vector.broadcast %97 : vector<1x1xf32> to vector<8x1xf32>
    %99 = vector.shape_cast %96 : vector<1x1xf32> to vector<1x1xf32>
    %100 = vector.broadcast %99 : vector<1x1xf32> to vector<8x1xf32>
    %101 = arith.select %44, %98, %100 : vector<8x1xi1>, vector<8x1xf32>
    %102 = vector.broadcast %101 : vector<8x1xf32> to vector<8x256xf32>
    %103 = arith.mulf %70, %102 : vector<8x256xf32>
    %cst_27 = arith.constant dense<0.000000e+00> : vector<8x256xf32>
    %104 = tpu.matmul %4, %103, %cst_27 {dimension_numbers = #tpu.dot_dimension_numbers<[1], [0], [0], [1], [0, 0, 1, 1], [], []>} : vector<8x8xf32>, vector<8x256xf32>, vector<8x256xf32> -> vector<8x256xf32>
    %105 = vector.broadcast %5 : vector<8x1xf32> to vector<8x256xf32>
    %106 = arith.addf %104, %105 : vector<8x256xf32>
    %c0_28 = arith.constant 0 : index
    %c0_29 = arith.constant 0 : index
    %107 = vector.load %arg3[%c0_28, %c0_29] : memref<8x256xf32, #tpu.memory_space<vmem>>, vector<8x256xf32>
    tpu.vector_store %arg3[%c0_28, %c0_29], %106 {strides = array<i32>} : memref<8x256xf32, #tpu.memory_space<vmem>>, vector<8x256xf32>,
    %cst_30 = arith.constant 5.000000e-01 : f32
    %108 = vector.broadcast %cst_30 : f32 to vector<1x1xf32>
    %109 = arith.mulf %108, %30 : vector<1x1xf32>
    %cst_31 = arith.constant 2.000000e+00 : f32
    %110 = vector.broadcast %cst_31 : f32 to vector<1x1xf32>
    %111 = arith.divf %109, %110 : vector<1x1xf32>
    %cst_32 = arith.constant 2.048000e+03 : f32
    %112 = vector.broadcast %cst_32 : f32 to vector<1x1xf32>
    %113 = arith.divf %36, %112 : vector<1x1xf32>
    %cst_33 = arith.constant 2.048000e+03 : f32
    %114 = vector.broadcast %cst_33 : f32 to vector<1x1xf32>
    %115 = arith.divf %41, %114 : vector<1x1xf32>
    %116 = tpu.iota {dimensions = array<i32: 1>} : vector<1x128xi32>
    %c0_i32 = arith.constant 0 : i32
    %117 = vector.broadcast %c0_i32 : i32 to vector<1x128xi32>
    %118 = arith.cmpi eq, %116, %117 : vector<1x128xi32>
    %cst_34 = arith.constant 0.000000e+00 : f32
    %119 = vector.shape_cast %111 : vector<1x1xf32> to vector<1x1xf32>
    %120 = vector.broadcast %119 : vector<1x1xf32> to vector<1x128xf32>
    %121 = vector.broadcast %cst_34 : f32 to vector<1x128xf32>
    %122 = arith.select %118, %120, %121 : vector<1x128xi1>, vector<1x128xf32>
    %c1_i32 = arith.constant 1 : i32
    %123 = vector.broadcast %c1_i32 : i32 to vector<1x128xi32>
    %124 = arith.cmpi eq, %116, %123 : vector<1x128xi32>
    %125 = vector.shape_cast %113 : vector<1x1xf32> to vector<1x1xf32>
    %126 = vector.broadcast %125 : vector<1x1xf32> to vector<1x128xf32>
    %127 = arith.select %124, %126, %122 : vector<1x128xi1>, vector<1x128xf32>
    %c2_i32 = arith.constant 2 : i32
    %128 = vector.broadcast %c2_i32 : i32 to vector<1x128xi32>
    %129 = arith.cmpi eq, %116, %128 : vector<1x128xi32>
    %130 = vector.shape_cast %115 : vector<1x1xf32> to vector<1x1xf32>
    %131 = vector.broadcast %130 : vector<1x1xf32> to vector<1x128xf32>
    %132 = arith.select %129, %131, %127 : vector<1x128xi1>, vector<1x128xf32>
    %c0_35 = arith.constant 0 : index
    %c0_36 = arith.constant 0 : index
    %133 = vector.load %arg4[%c0_35, %c0_36] : memref<1x128xf32, #tpu.memory_space<vmem>>, vector<1x128xf32>
    tpu.vector_store %arg4[%c0_35, %c0_36], %132 {strides = array<i32>} : memref<1x128xf32, #tpu.memory_space<vmem>>, vector<1x128xf32>,
    return
  }
}

</mosaic_0001>

<llo_original>
// kernel: tpu_custom_call.1
$region0: #{tpu_custom_call.1}
  #allocation0 [shape = 'u32[]', space=smem, size = 0x4, offset = 0x4, fixed_abs, tag = 'smem constant byte address 0x4 - core index']
  #allocation1 [shape = 'u32[144,128]{1,0:T(1,128)}', space=vmem, size = 0x12000, scoped, tag = 'internal scratch']
  %s0 = inlined_call_operand.hbm [shape: f32[8,256], index: 0, kind: input, shape index: {}]
  %s1 = inlined_call_operand.hbm [shape: f32[8,256], index: 1, kind: input, shape index: {}]
  %s2 = inlined_call_operand.hbm [shape: f32[16,128], index: 2, kind: input, shape index: {}]
  %s3 = inlined_call_operand.hbm [shape: f32[8,256], index: 3, kind: output, shape index: {0}]
  %s4 = inlined_call_operand.hbm [shape: f32[1,128], index: 4, kind: output, shape index: {1}]
  %5 = xla_tuple %s3, %s4
  %s6 = sld [smem:[#allocation0]]
  $region42: #{tpu_custom_call.1} parent=0
    _
  %s8 = ssub.s32 1, %s6
  %s9 = scalar_select 0, %s8, %s6
  $region1: #{tpu_custom_call.1} parent=0
    #allocation2 [shape = 'u8[8192]{0}', space=vmem, size = 0x2000, scoped, tag = 'input window, operand 0, single buffered']
    #allocation3 [shape = 's32[1]{0}', space=sflag, size = 0x4, scoped, tag = 'scoped memory for tpu_custom_call.1']
    #allocation4 [shape = 's32[1]{0}', space=sflag, size = 0x4, scoped, tag = 'scoped memory for tpu_custom_call.1']
    #allocation5 [shape = 'u8[8192]{0}', space=vmem, size = 0x2000, scoped, tag = 'input window, operand 1, single buffered']
    #allocation6 [shape = 's32[1]{0}', space=sflag, size = 0x4, scoped, tag = 'scoped memory for tpu_custom_call.1']
    #allocation7 [shape = 'u8[8192]{0}', space=vmem, size = 0x2000, scoped, tag = 'input window, operand 2, single buffered']
    #allocation8 [shape = 'u8[8192]{0}', space=vmem, size = 0x2000, scoped, tag = 'output window, operand 0, single buffered']
    #allocation9 [shape = 'u8[512]{0}', space=vmem, size = 0x400, scoped, tag = 'output window, operand 1, single buffered']
    #allocation10 [shape = 's32[1]{0}', space=sflag, size = 0x4, scoped, tag = 'scoped memory for tpu_custom_call.1']
    %10 = vsyncpa [#allocation3], 0
    %11 = vsyncpa [#allocation6], 0
    %12 = vsyncpa [#allocation4], 0
    %13 = vsyncpa [#allocation10], 0
    // Predicated region
    $region2: #{tpu_custom_call.1} parent=1 // pred_check
      _
    $region3: #{tpu_custom_call.1} parent=1 // pred_check_branch
      %15 = sbr.rel (0) target = $region5
    $region4: #{tpu_custom_call.1} parent=1 // pred_region
      %s17 = ssub.s32 256, 256
      %18 = vsyncadd [#allocation3], %s17
      %s20 = sshll.u32 [#allocation2], 4
      %s21 = int_to_ptr.vmem [resolvable:$true] %s20
      %23 = dma.hbm_to_vmem [thread:$0]  %s0, 256, %s21, [#allocation3]
    $region5: #{tpu_custom_call.1} parent=1 // pred_fallthru
      _
    // Predicated region
    $region6: #{tpu_custom_call.1} parent=1 // pred_check
      _
    $region7: #{tpu_custom_call.1} parent=1 // pred_check_branch
      %25 = sbr.rel (0) target = $region9
    $region8: #{tpu_custom_call.1} parent=1 // pred_region
      %s27 = ssub.s32 256, 256
      %28 = vsyncadd [#allocation6], %s27
      %s30 = sshll.u32 [#allocation5], 4
      %s31 = int_to_ptr.vmem [resolvable:$true] %s30
      %33 = dma.hbm_to_vmem [thread:$0]  %s1, 256, %s31, [#allocation6]
    $region9: #{tpu_custom_call.1} parent=1 // pred_fallthru
      _
    // Predicated region
    $region10: #{tpu_custom_call.1} parent=1 // pred_check
      _
    $region11: #{tpu_custom_call.1} parent=1 // pred_check_branch
      %35 = sbr.rel (0) target = $region13
    $region12: #{tpu_custom_call.1} parent=1 // pred_region
      %s37 = ssub.s32 256, 256
      %38 = vsyncadd [#allocation6], %s37
      %s39 = sshll.u32 [#allocation7], 4
      %s40 = int_to_ptr.vmem [resolvable:$true] %s39
      %45 = dma.hbm_to_vmem [thread:$0]  %s2, 256, %s40, [#allocation6], 128, 128, 8
    $region13: #{tpu_custom_call.1} parent=1 // pred_fallthru
      _
    // Predicated region
    $region14: #{tpu_custom_call.1} parent=1 // pred_check
      _
    $region15: #{tpu_custom_call.1} parent=1 // pred_check_branch
      %47 = sbr.rel (0) target = $region17
    $region16: #{tpu_custom_call.1} parent=1 // pred_region
      %48 = dma.done [#allocation3], 256
    $region17: #{tpu_custom_call.1} parent=1 // pred_fallthru
      _
    // Predicated region
    $region18: #{tpu_custom_call.1} parent=1 // pred_check
      _
    $region19: #{tpu_custom_call.1} parent=1 // pred_check_branch
      %50 = sbr.rel (0) target = $region21
    $region20: #{tpu_custom_call.1} parent=1 // pred_region
      %51 = dma.done [#allocation6], 256
    $region21: #{tpu_custom_call.1} parent=1 // pred_fallthru
      _
    // Predicated region
    $region22: #{tpu_custom_call.1} parent=1 // pred_check
      _
    $region23: #{tpu_custom_call.1} parent=1 // pred_check_branch
      %53 = sbr.rel (0) target = $region25
    $region24: #{tpu_custom_call.1} parent=1 // pred_region
      %54 = dma.done [#allocation6], 256
    $region25: #{tpu_custom_call.1} parent=1 // pred_fallthru
      _
    %v55 = vld [vmem:[#allocation2] sm:$0xff]
    %v56 = vld [vmem:[#allocation2 + $0x8] sm:$0xff]
    %v57 = vld [vmem:[#allocation5] sm:$0xff]
    %v58 = vld [vmem:[#allocation5 + $0x8] sm:$0xff]
    %v59 = vld [vmem:[#allocation7] sm:$0xff]
    %v60 = vld [vmem:[#allocation7 + $0x8] sm:$0xff]
    %v61 = vld [vmem:[#allocation7] sm:$0xff]
    %63 = vset.pattern.permute.xlu0 8
    %64 = vperm.xlu0 %63, %v59
    %v65 = vpop.permute.xlu0 %64
    %68 = vset.pattern.permute.xlu0 8
    %69 = vperm.xlu0 %68, %v60
    %v70 = vpop.permute.xlu0 %69
    %vm72 = vcmask 64512
    %v73 = vsel %vm72, %v59, 0
    %v75 = vsel %vm72, %v60, 0
    %77 = vmatprep.subr.mxu0 0.0
    %78 = vmatpush1.msra.mxu0 0.0
    %79 = vmatprep.subr.mxu0 0.0
    %80 = vmatpush1.msra.mxu0 0.0
    %81 = vmatprep.subr.mxu0 0.0
    %82 = vmatpush1.msra.mxu0 0.0
    %83 = vmatprep.subr.mxu0 0.0
    %84 = vmatpush1.msra.mxu0 0.0
    %85 = vmatprep.subr.mxu0 0.0
    %86 = vmatpush1.msra.mxu0 0.0
    %87 = vmatprep.subr.mxu0 0.0
    %88 = vmatpush1.msra.mxu0 0.0
    %89 = vmatprep.subr.mxu0 0.0
    %90 = vmatpush1.msra.mxu0 0.0
    %91 = vmatprep.subr.mxu0 0.0
    %92 = vmatpush1.msra.mxu0 0.0
    %93 = vmatprep.subr.mxu0 0.0
    %94 = vmatpush1.msra.mxu0 0.0
    %95 = vmatprep.subr.mxu0 0.0
    %96 = vmatpush1.msra.mxu0 0.0
    %97 = vmatprep.subr.mxu0 0.0
    %98 = vmatpush1.msra.mxu0 0.0
    %99 = vmatprep.subr.mxu0 0.0
    %100 = vmatpush1.msra.mxu0 0.0
    %101 = vmatprep.subr.mxu0 0.0
    %102 = vmatpush1.msra.mxu0 0.0
    %103 = vmatprep.subr.mxu0 0.0
    %104 = vmatpush1.msra.mxu0 0.0
    %105 = vmatprep.subr.mxu0 0.0
    %106 = vmatpush1.msra.mxu0 0.0
    %107 = vmatprep.subr.mxu0 %v56
    %108 = vmatpush1.msra.mxu0 %v55
    %109 = vmatprep.subr.mxu0 0.0
    %110 = vmatpush2.msra.mxu0 0.0
    %111 = vmatprep.subr.mxu0 0.0
    %112 = vmatpush2.msra.mxu0 0.0
    %113 = vmatprep.subr.mxu0 0.0
    %114 = vmatpush2.msra.mxu0 0.0
    %115 = vmatprep.subr.mxu0 0.0
    %116 = vmatpush2.msra.mxu0 0.0
    %117 = vmatprep.subr.mxu0 0.0
    %118 = vmatpush2.msra.mxu0 0.0
    %119 = vmatprep.subr.mxu0 0.0
    %120 = vmatpush2.msra.mxu0 0.0
    %121 = vmatprep.subr.mxu0 0.0
    %122 = vmatpush2.msra.mxu0 0.0
    %123 = vmatprep.subr.mxu0 0.0
    %124 = vmatpush2.msra.mxu0 0.0
    %125 = vmatprep.subr.mxu0 0.0
    %126 = vmatpush2.msra.mxu0 0.0
    %127 = vmatprep.subr.mxu0 0.0
    %128 = vmatpush2.msra.mxu0 0.0
    %129 = vmatprep.subr.mxu0 0.0
    %130 = vmatpush2.msra.mxu0 0.0
    %131 = vmatprep.subr.mxu0 0.0
    %132 = vmatpush2.msra.mxu0 0.0
    %133 = vmatprep.subr.mxu0 0.0
    %134 = vmatpush2.msra.mxu0 0.0
    %135 = vmatprep.subr.mxu0 0.0
    %136 = vmatpush2.msra.mxu0 0.0
    %137 = vmatprep.subr.mxu0 0.0
    %138 = vmatpush2.msra.mxu0 0.0
    %139 = vmatprep.subr.mxu0 0.0
    %140 = vmatpush2.msra.mxu0 0.0
    %141 = vmatprep.mubr.f32.mxu0 0.0
    %142 = vmatmul.mubr.f32.gmra.mxu0 %v73
    %v143 = vpop.f32.mrf.mxu0
    %v144 = vadd.f32 %v65, %v143
    %v145 = vpop.f32.mrf.mxu0
    %v146 = vadd.f32 %v65, %v145
    %147 = vmatprep.mubr.f32.mxu0 0.0
    %148 = vmatmul.mubr.f32.gmra.mxu0 %v75
    %v149 = vpop.f32.mrf.mxu0
    %v150 = vadd.f32 %v70, %v149
    %v151 = vpop.f32.mrf.mxu0
    %v152 = vadd.f32 %v70, %v151
    %153 = vdwg.mxu0
    %v154 = vmax.f32 %v150, -30.0
    %v155 = vmax.f32 %v152, -30.0
    %v156 = vmin.f32 %v154, 20.0
    %v157 = vmin.f32 %v155, 20.0
    %v158 = vmul.f32 %v156, 0.5
    %v159 = vmul.f32 %v157, 0.5
    %v160 = vmul.f32 %v158, 1.442695
    %v161 = vpow.pop %v160
    %v162 = vmul.f32 %v159, 1.442695
    %v163 = vpow.pop %v162
    %v164 = vmul.f32 %v161, %v161
    %v165 = vmul.f32 %v163, %v163
    %v166 = vmul.f32 %v161, %v57
    %v167 = vmul.f32 %v163, %v58
    %v168 = vadd.f32 %v144, %v166
    %v169 = vadd.f32 %v146, %v167
    %v170 = vmul.f32 %v144, %v144
    %v171 = vmul.f32 %v146, %v146
    %v172 = vadd.f32 %v170, %v164
    %v173 = vadd.f32 %v171, %v165
    %v174 = vsub.f32 %v172, 1.0
    %v175 = vsub.f32 %v173, 1.0
    %v176 = vsub.f32 %v174, %v156
    %v177 = vsub.f32 %v175, %v157
    %v178 = vadd.f32 %v176, %v177
    %179 = vadd.xlane.f32.xlu0 %v178
    %v180 = vpop.xlane.xlu0 %179
    %v181 = vrot.slane %v180, 4
    %v182 = vadd.f32 %v180, %v181
    %v183 = vrot.slane %v182, 2
    %v184 = vadd.f32 %v182, %v183
    %v185 = vrot.slane %v184, 1
    %v186 = vadd.f32 %v184, %v185
    %s187 = vtos %v186
    %v188 = vstv %s187
    %v189 = vand.u32 2147483647, %v144
    %v190 = vand.u32 2147483647, %v146
    %v191 = vadd.f32 %v189, %v190
    %192 = vadd.xlane.f32.xlu0 %v191
    %v193 = vpop.xlane.xlu0 %192
    %v194 = vrot.slane %v193, 4
    %v195 = vadd.f32 %v193, %v194
    %v196 = vrot.slane %v195, 2
    %v197 = vadd.f32 %v195, %v196
    %v198 = vrot.slane %v197, 1
    %v199 = vadd.f32 %v197, %v198
    %s200 = vtos %v199
    %v201 = vstv %s200
    %v202 = vadd.f32 %v161, %v163
    %203 = vadd.xlane.f32.xlu0 %v202
    %v204 = vpop.xlane.xlu0 %203
    %v205 = vrot.slane %v204, 4
    %v206 = vadd.f32 %v204, %v205
    %v207 = vrot.slane %v206, 2
    %v208 = vadd.f32 %v206, %v207
    %v209 = vrot.slane %v208, 1
    %v210 = vadd.f32 %v208, %v209
    %s211 = vtos %v210
    %v212 = vstv %s211
    %v213 = vlaneseq
    %v214 = vshrl.u32 %v213, 7
    %vm215 = vcmp.lt.s32.totalorder %v214, 4
    %v216 = vadd.f32 %v168, %v169
    %217 = vadd.xlane.f32.xlu0 %v216
    %v218 = vpop.xlane.xlu0 %217
    %v219 = vrot.slane %v218, 4
    %v220 = vadd.f32 %v218, %v219
    %v221 = vrot.slane %v220, 2
    %v222 = vadd.f32 %v220, %v221
    %v223 = vrot.slane %v222, 1
    %v224 = vadd.f32 %v222, %v223
    %s225 = vtos %v224
    %v226 = vstv %s225
    %v227 = vsel %vm215, 1, 0
    %vm228 = vcmp.eq.s32.totalorder %v227, 1
    %v229 = vsel %vm228, %v168, 0.0
    %v230 = vsel %vm228, %v169, 0.0
    %v231 = vadd.f32 %v229, %v230
    %232 = vadd.xlane.f32.xlu0 %v231
    %v233 = vpop.xlane.xlu0 %232
    %v234 = vrot.slane %v233, 4
    %v235 = vadd.f32 %v233, %v234
    %v236 = vrot.slane %v235, 2
    %v237 = vadd.f32 %v235, %v236
    %v238 = vrot.slane %v237, 1
    %v239 = vadd.f32 %v237, %v238
    %s240 = vtos %v239
    %v241 = vstv %s240
    %v242 = vmul.f32 %v241, 0.0009765625
    %v243 = vsub.f32 %v226, %v241
    %v244 = vmul.f32 %v243, 0.0009765625
    %v245 = vsel %vm215, %v242, %v244
    %v246 = vsub.f32 %v168, %v245
    %v247 = vsub.f32 %v169, %v245
    %v248 = vmul.f32 %v246, %v246
    %v249 = vmul.f32 %v247, %v247
    %v250 = vadd.f32 %v248, %v249
    %251 = vadd.xlane.f32.xlu0 %v250
    %v252 = vpop.xlane.xlu0 %251
    %v253 = vrot.slane %v252, 4
    %v254 = vadd.f32 %v252, %v253
    %v255 = vrot.slane %v254, 2
    %v256 = vadd.f32 %v254, %v255
    %v257 = vrot.slane %v256, 1
    %v258 = vadd.f32 %v256, %v257
    %s259 = vtos %v258
    %v260 = vstv %s259
    %v261 = vsel %vm228, %v248, 0.0
    %v262 = vsel %vm228, %v249, 0.0
    %v263 = vadd.f32 %v261, %v262
    %264 = vadd.xlane.f32.xlu0 %v263
    %v265 = vpop.xlane.xlu0 %264
    %v266 = vrot.slane %v265, 4
    %v267 = vadd.f32 %v265, %v266
    %v268 = vrot.slane %v267, 2
    %v269 = vadd.f32 %v267, %v268
    %v270 = vrot.slane %v269, 1
    %v271 = vadd.f32 %v269, %v270
    %s272 = vtos %v271
    %v273 = vstv %s272
    %v274 = vmul.f32 %v273, 0.0009765625
    %v275 = vadd.f32 %v274, 1e-05
    %v276 = vrsqrt.pop %v275
    %v277 = vsub.f32 %v260, %v273
    %v278 = vmul.f32 %v277, 0.0009765625
    %v279 = vadd.f32 %v278, 1e-05
    %v280 = vrsqrt.pop %v279
    %v281 = vsel %vm215, %v276, %v280
    %v282 = vmul.f32 %v246, %v281
    %v283 = vmul.f32 %v247, %v281
    %285 = vset.pattern.permute.xlu0 24
    %286 = vperm.xlu0 %285, %v61
    %v287 = vpop.permute.xlu0 %286
    %289 = vrot.lane.b32.xlu0 %v61, 112
    %v290 = vpop.permute.xlu0 %289
    %v291 = vsel %vm72, %v290, 0
    %293 = vmatprep.subr.mxu0 0.0
    %294 = vmatpush1.msra.mxu0 0.0
    %295 = vmatprep.subr.mxu0 0.0
    %296 = vmatpush1.msra.mxu0 0.0
    %297 = vmatprep.subr.mxu0 0.0
    %298 = vmatpush1.msra.mxu0 0.0
    %299 = vmatprep.subr.mxu0 0.0
    %300 = vmatpush1.msra.mxu0 0.0
    %301 = vmatprep.subr.mxu0 0.0
    %302 = vmatpush1.msra.mxu0 0.0
    %303 = vmatprep.subr.mxu0 0.0
    %304 = vmatpush1.msra.mxu0 0.0
    %305 = vmatprep.subr.mxu0 0.0
    %306 = vmatpush1.msra.mxu0 0.0
    %307 = vmatprep.subr.mxu0 0.0
    %308 = vmatpush1.msra.mxu0 0.0
    %309 = vmatprep.subr.mxu0 0.0
    %310 = vmatpush1.msra.mxu0 0.0
    %311 = vmatprep.subr.mxu0 0.0
    %312 = vmatpush1.msra.mxu0 0.0
    %313 = vmatprep.subr.mxu0 0.0
    %314 = vmatpush1.msra.mxu0 0.0
    %315 = vmatprep.subr.mxu0 0.0
    %316 = vmatpush1.msra.mxu0 0.0
    %317 = vmatprep.subr.mxu0 0.0
    %318 = vmatpush1.msra.mxu0 0.0
    %319 = vmatprep.subr.mxu0 0.0
    %320 = vmatpush1.msra.mxu0 0.0
    %321 = vmatprep.subr.mxu0 0.0
    %322 = vmatpush1.msra.mxu0 0.0
    %323 = vmatprep.subr.mxu0 %v283
    %324 = vmatpush1.msra.mxu0 %v282
    %325 = vmatprep.subr.mxu0 0.0
    %326 = vmatpush2.msra.mxu0 0.0
    %327 = vmatprep.subr.mxu0 0.0
    %328 = vmatpush2.msra.mxu0 0.0
    %329 = vmatprep.subr.mxu0 0.0
    %330 = vmatpush2.msra.mxu0 0.0
    %331 = vmatprep.subr.mxu0 0.0
    %332 = vmatpush2.msra.mxu0 0.0
    %333 = vmatprep.subr.mxu0 0.0
    %334 = vmatpush2.msra.mxu0 0.0
    %335 = vmatprep.subr.mxu0 0.0
    %336 = vmatpush2.msra.mxu0 0.0
    %337 = vmatprep.subr.mxu0 0.0
    %338 = vmatpush2.msra.mxu0 0.0
    %339 = vmatprep.subr.mxu0 0.0
    %340 = vmatpush2.msra.mxu0 0.0
    %341 = vmatprep.subr.mxu0 0.0
    %342 = vmatpush2.msra.mxu0 0.0
    %343 = vmatprep.subr.mxu0 0.0
    %344 = vmatpush2.msra.mxu0 0.0
    %345 = vmatprep.subr.mxu0 0.0
    %346 = vmatpush2.msra.mxu0 0.0
    %347 = vmatprep.subr.mxu0 0.0
    %348 = vmatpush2.msra.mxu0 0.0
    %349 = vmatprep.subr.mxu0 0.0
    %350 = vmatpush2.msra.mxu0 0.0
    %351 = vmatprep.subr.mxu0 0.0
    %352 = vmatpush2.msra.mxu0 0.0
    %353 = vmatprep.subr.mxu0 0.0
    %354 = vmatpush2.msra.mxu0 0.0
    %355 = vmatprep.subr.mxu0 0.0
    %356 = vmatpush2.msra.mxu0 0.0
    %357 = vmatprep.mubr.f32.mxu0 0.0
    %358 = vmatmul.mubr.f32.gmra.mxu0 %v291
    %v359 = vpop.f32.mrf.mxu0
    %v360 = vadd.f32 %v287, %v359
    %v361 = vpop.f32.mrf.mxu0
    %v362 = vadd.f32 %v287, %v361
    %363 = vdwg.mxu0
    %364 = vst [vmem:[#allocation8] sm:$0xff] %v360
    %365 = vst [vmem:[#allocation8 + $0x8] sm:$0xff] %v362
    %v366 = vmul.f32 %v188, 0.5
    %v367 = vrcp.pop 2.0
    %v368 = vmul.f32 %v366, %v367
    %v369 = vrcp.pop 2048.0
    %v370 = vmul.f32 %v201, %v369
    %v371 = vmul.f32 %v212, %v369
    %v372 = vlaneseq
    %v373 = vand.u32 %v372, 127
    %vm374 = vcmp.eq.s32.totalorder %v373, 0
    %v375 = vsel %vm374, %v368, 0.0
    %vm376 = vcmp.eq.s32.totalorder %v373, 1
    %v377 = vsel %vm376, %v370, %v375
    %vm378 = vcmp.eq.s32.totalorder %v373, 2
    %v379 = vsel %vm378, %v371, %v377
    %380 = vst [vmem:[#allocation9] sm:$0x1] %v379
    // Predicated region
    $region26: #{tpu_custom_call.1} parent=1 // pred_check
      _
    $region27: #{tpu_custom_call.1} parent=1 // pred_check_branch
      %382 = sbr.rel (0) target = $region29
    $region28: #{tpu_custom_call.1} parent=1 // pred_region
      %s384 = ssub.s32 256, 256
      %385 = vsyncadd [#allocation4], %s384
      %s387 = sshll.u32 [#allocation8], 4
      %s388 = int_to_ptr.vmem [resolvable:$true] %s387
      %390 = dma.vmem_to_hbm [thread:$0]  %s388, 256, %s3, [#allocation4]
    $region29: #{tpu_custom_call.1} parent=1 // pred_fallthru
      _
    // Predicated region
    $region30: #{tpu_custom_call.1} parent=1 // pred_check
      _
    $region31: #{tpu_custom_call.1} parent=1 // pred_check_branch
      %392 = sbr.rel (0) target = $region33
    $region32: #{tpu_custom_call.1} parent=1 // pred_region
      %s394 = ssub.s32 16, 16
      %395 = vsyncadd [#allocation10], %s394
      %s397 = sshll.u32 [#allocation9], 4
      %s398 = int_to_ptr.vmem [resolvable:$true] %s397
      %400 = dma.vmem_to_hbm [thread:$0]  %s398, 16, %s4, [#allocation10]
    $region33: #{tpu_custom_call.1} parent=1 // pred_fallthru
      _
    // Predicated region
    $region34: #{tpu_custom_call.1} parent=1 // pred_check
      _
    $region35: #{tpu_custom_call.1} parent=1 // pred_check_branch
      %402 = sbr.rel (0) target = $region37
    $region36: #{tpu_custom_call.1} parent=1 // pred_region
      %403 = dma.done [#allocation4], 256
    $region37: #{tpu_custom_call.1} parent=1 // pred_fallthru
      _
    // Predicated region
    $region38: #{tpu_custom_call.1} parent=1 // pred_check
      _
    $region39: #{tpu_custom_call.1} parent=1 // pred_check_branch
      %405 = sbr.rel (0) target = $region41
    $region40: #{tpu_custom_call.1} parent=1 // pred_region
      %406 = dma.done [#allocation10], 16
    $region41: #{tpu_custom_call.1} parent=1 // pred_fallthru
      _
    %407 = vsyncpa [#allocation3], 1
    %408 = vsyncpa [#allocation6], 1
    %409 = vsyncpa [#allocation4], 1
    %410 = vsyncpa [#allocation10], 1

</llo_original>
